<compile_context>
chip_gen: v5e
topology: v5e:2x2
jax: 0.10.0
libtpu: 0.0.40
codegen_flags: <defaults>
</compile_context>

<pallas_src>
import functools

import jax
import jax.numpy as jnp
from jax.experimental import pallas as pl
from jax.experimental.pallas import tpu as pltpu


HIDDEN = 32        # fc1 output features (module spec)
OUT = 1            # fc2 output features (module spec)
HIDDEN_PAD = 128   # lane-dense padded hidden width
OUT_PAD = 128      # lane-dense padded output width


# ----------------------------------------------------------------------------
# Pallas kernel: fused  relu(x @ W1 + b1) @ W2 + b2  for one M-tile.
# ----------------------------------------------------------------------------
def _mlp_kernel(x_ref, w1_ref, b1_ref, w2_ref, b2_ref, o_ref):
    # fc1 on the MXU, f32 accumulation; bias + ReLU on the f32 accumulator.
    h = jnp.dot(x_ref[...], w1_ref[...], preferred_element_type=jnp.float32)
    h = jnp.maximum(h + b1_ref[...], 0.0)                 # (TM, 128) + (1, 128)
    # fc2 on the MXU; hidden activation never leaves the kernel.
    y = jnp.dot(h, w2_ref[...], preferred_element_type=jnp.float32)
    o_ref[...] = (y + b2_ref[...]).astype(o_ref.dtype)    # lane-dense full store


def _round_up(x, m):
    return (x + m - 1) // m * m


@functools.partial(jax.jit, static_argnames=("block_m",))
def meta_learner_forward(x, w1, b1, w2, b2, *, block_m=256):
    """x: (M, input_size) f32; packed/padded params from pack_params -> (M, 1) f32."""
    M, K = x.shape
    tm = min(block_m, _round_up(M, 8))        # sublane-aligned row tile
    Mp = _round_up(M, tm)
    xp = x if Mp == M else jnp.pad(x, ((0, Mp - M), (0, 0)))
    grid = (Mp // tm,)

    out = pl.pallas_call(
        _mlp_kernel,
        out_shape=jax.ShapeDtypeStruct((Mp, OUT_PAD), jnp.float32),
        grid=grid,
        in_specs=[
            pl.BlockSpec((tm, K), lambda i: (i, 0)),                 # x row tile
            pl.BlockSpec((K, HIDDEN_PAD), lambda i: (0, 0)),         # W1 (resident)
            pl.BlockSpec((1, HIDDEN_PAD), lambda i: (0, 0)),         # b1
            pl.BlockSpec((HIDDEN_PAD, OUT_PAD), lambda i: (0, 0)),   # W2
            pl.BlockSpec((1, OUT_PAD), lambda i: (0, 0)),            # b2
        ],
        out_specs=pl.BlockSpec((tm, OUT_PAD), lambda i: (i, 0)),
        compiler_params=pltpu.CompilerParams(
            dimension_semantics=("parallel",)),   # megacore split over row tiles (v7x)
    )(xp, w1, b1, w2, b2)

    return out[:M, :OUT]


# ----------------------------------------------------------------------------
# Parameters: PyTorch-shaped init, then one-time pack (transpose + zero-pad).
# ----------------------------------------------------------------------------
def init_params(key, input_size):
    k1, k2, k3, k4 = jax.random.split(key, 4)
    # PyTorch layout: fc.weight is (out_features, in_features).
    w1 = jax.random.normal(k1, (HIDDEN, input_size), jnp.float32) / jnp.sqrt(input_size)
    b1 = 0.01 * jax.random.normal(k2, (HIDDEN,), jnp.float32)
    w2 = jax.random.normal(k3, (OUT, HIDDEN), jnp.float32) / jnp.sqrt(HIDDEN)
    b2 = 0.01 * jax.random.normal(k4, (OUT,), jnp.float32)
    return {"w1": w1, "b1": b1, "w2": w2, "b2": b2}


def pack_params(params):
    """One-time preprocessing: (out,in)->(in,out) transpose + zero-pad widths to 128."""
    input_size = params["w1"].shape[1]
    w1 = jnp.zeros((input_size, HIDDEN_PAD), jnp.float32).at[:, :HIDDEN].set(params["w1"].T)
    b1 = jnp.zeros((1, HIDDEN_PAD), jnp.float32).at[:, :HIDDEN].set(params["b1"])
    w2 = jnp.zeros((HIDDEN_PAD, OUT_PAD), jnp.float32).at[:HIDDEN, :OUT].set(params["w2"].T)
    b2 = jnp.zeros((1, OUT_PAD), jnp.float32).at[:, :OUT].set(params["b2"])
    return w1, b1, w2, b2


def meta_learner_reference(x, params):
    """Pure-JAX reference matching MetaLearner.forward exactly."""
    h = jnp.maximum(x @ params["w1"].T + params["b1"], 0.0)
    return h @ params["w2"].T + params["b2"]


if __name__ == "__main__":
    key = jax.random.PRNGKey(0)
    kx, kp, kx2 = jax.random.split(key, 3)

    input_size = 16
    params = init_params(kp, input_size)
    w1, b1, w2, b2 = pack_params(params)

    # Small-batch run (single tile after sublane padding).
    x = jax.random.normal(kx, (2, input_size), jnp.float32)
    out = meta_learner_forward(x, w1, b1, w2, b2)
    jax.block_until_ready(out)
    ref = meta_learner_reference(x, params)
    assert out.shape == (2, 1) and out.dtype == jnp.float32
    assert jnp.allclose(out, ref, atol=1e-4, rtol=1e-4)

    # Larger batch exercising the multi-tile pipelined / megacore grid path
    # (600 rows -> padded to 768, TM=256, grid=(3,)).
    xl = jax.random.normal(kx2, (600, input_size), jnp.float32)
    outl = meta_learner_forward(xl, w1, b1, w2, b2)
    jax.block_until_ready(outl)
    refl = meta_learner_reference(xl, params)
    assert outl.shape == (600, 1)
    assert jnp.allclose(outl, refl, atol=1e-4, rtol=1e-4)

    print("KERNEL_OK")
</pallas_src>

<mosaic_0001>
module attributes {stable_mosaic.version = 11 : i64} {
  func.func @_mlp_kernel(%arg0: i32, %arg1: memref<8x16xf32, #tpu.memory_space<vmem>>, %arg2: memref<16x128xf32, #tpu.memory_space<vmem>>, %arg3: memref<1x128xf32, #tpu.memory_space<vmem>>, %arg4: memref<128x128xf32, #tpu.memory_space<vmem>>, %arg5: memref<1x128xf32, #tpu.memory_space<vmem>>, %arg6: memref<8x128xf32, #tpu.memory_space<vmem>>) attributes {dimension_semantics = [#tpu.dimension_semantics<parallel>], iteration_bounds = array<i64: 1>, scalar_prefetch = 0 : i64, scratch_operands = 0 : i64, tpu.core_type = #tpu.core_type<tc>, window_params = [{transform_indices = @transform_0, window_bounds = array<i64: 8, 16>}, {pipeline_mode = #tpu.pipeline_mode<synchronous>, transform_indices = @transform_1, window_bounds = array<i64: 16, 128>}, {pipeline_mode = #tpu.pipeline_mode<synchronous>, transform_indices = @transform_2, window_bounds = array<i64: 1, 128>}, {pipeline_mode = #tpu.pipeline_mode<synchronous>, transform_indices = @transform_3, window_bounds = array<i64: 128, 128>}, {pipeline_mode = #tpu.pipeline_mode<synchronous>, transform_indices = @transform_4, window_bounds = array<i64: 1, 128>}, {transform_indices = @transform_5, window_bounds = array<i64: 8, 128>}]} {
    %c0 = arith.constant 0 : index
    %c0_0 = arith.constant 0 : index
    %0 = vector.load %arg1[%c0, %c0_0] : memref<8x16xf32, #tpu.memory_space<vmem>>, vector<8x16xf32>
    %c0_1 = arith.constant 0 : index
    %c0_2 = arith.constant 0 : index
    %1 = vector.load %arg2[%c0_1, %c0_2] : memref<16x128xf32, #tpu.memory_space<vmem>>, vector<16x128xf32>
    %cst = arith.constant dense<0.000000e+00> : vector<8x128xf32>
    %2 = tpu.matmul %0, %1, %cst {dimension_numbers = #tpu.dot_dimension_numbers<[1], [0], [0], [1], [0, 0, 1, 1], [], []>} : vector<8x16xf32>, vector<16x128xf32>, vector<8x128xf32> -> vector<8x128xf32>
    %c0_3 = arith.constant 0 : index
    %c0_4 = arith.constant 0 : index
    %3 = vector.load %arg3[%c0_3, %c0_4] : memref<1x128xf32, #tpu.memory_space<vmem>>, vector<1x128xf32>
    %4 = vector.broadcast %3 : vector<1x128xf32> to vector<8x128xf32>
    %5 = arith.addf %2, %4 : vector<8x128xf32>
    %cst_5 = arith.constant 0.000000e+00 : f32
    %6 = vector.broadcast %cst_5 : f32 to vector<8x128xf32>
    %7 = arith.maximumf %5, %6 : vector<8x128xf32>
    %c0_6 = arith.constant 0 : index
    %c0_7 = arith.constant 0 : index
    %8 = vector.load %arg4[%c0_6, %c0_7] : memref<128x128xf32, #tpu.memory_space<vmem>>, vector<128x128xf32>
    %cst_8 = arith.constant dense<0.000000e+00> : vector<8x128xf32>
    %9 = tpu.matmul %7, %8, %cst_8 {dimension_numbers = #tpu.dot_dimension_numbers<[1], [0], [0], [1], [0, 0, 1, 1], [], []>} : vector<8x128xf32>, vector<128x128xf32>, vector<8x128xf32> -> vector<8x128xf32>
    %c0_9 = arith.constant 0 : index
    %c0_10 = arith.constant 0 : index
    %10 = vector.load %arg5[%c0_9, %c0_10] : memref<1x128xf32, #tpu.memory_space<vmem>>, vector<1x128xf32>
    %11 = vector.broadcast %10 : vector<1x128xf32> to vector<8x128xf32>
    %12 = arith.addf %9, %11 : vector<8x128xf32>
    %c0_11 = arith.constant 0 : index
    %c0_12 = arith.constant 0 : index
    %13 = vector.load %arg6[%c0_11, %c0_12] : memref<8x128xf32, #tpu.memory_space<vmem>>, vector<8x128xf32>
    tpu.vector_store %arg6[%c0_11, %c0_12], %12 {strides = array<i32>} : memref<8x128xf32, #tpu.memory_space<vmem>>, vector<8x128xf32>,
    return
  }
  func.func @transform_0(%arg0: i32) -> (i32, i32) {
    %c0_i32 = arith.constant 0 : i32
    %c0_i32_0 = arith.constant 0 : i32
    return %arg0, %c0_i32 : i32, i32
  }
  func.func @transform_1(%arg0: i32) -> (i32, i32) {
    %c0_i32 = arith.constant 0 : i32
    %c0_i32_0 = arith.constant 0 : i32
    %c0_i32_1 = arith.constant 0 : i32
    return %c0_i32, %c0_i32_0 : i32, i32
  }
  func.func @transform_2(%arg0: i32) -> (i32, i32) {
    %c0_i32 = arith.constant 0 : i32
    %c0_i32_0 = arith.constant 0 : i32
    %c0_i32_1 = arith.constant 0 : i32
    return %c0_i32, %c0_i32_0 : i32, i32
  }
  func.func @transform_3(%arg0: i32) -> (i32, i32) {
    %c0_i32 = arith.constant 0 : i32
    %c0_i32_0 = arith.constant 0 : i32
    %c0_i32_1 = arith.constant 0 : i32
    return %c0_i32, %c0_i32_0 : i32, i32
  }
  func.func @transform_4(%arg0: i32) -> (i32, i32) {
    %c0_i32 = arith.constant 0 : i32
    %c0_i32_0 = arith.constant 0 : i32
    %c0_i32_1 = arith.constant 0 : i32
    return %c0_i32, %c0_i32_0 : i32, i32
  }
  func.func @transform_5(%arg0: i32) -> (i32, i32) {
    %c0_i32 = arith.constant 0 : i32
    %c0_i32_0 = arith.constant 0 : i32
    return %arg0, %c0_i32 : i32, i32
  }
}

</mosaic_0001>

<llo_original>
// kernel: meta_learner_forward.1
$region0: #{meta_learner_forward.1}
  #allocation0 [shape = 'u32[]', space=smem, size = 0x4, offset = 0x4, fixed_abs, tag = 'smem constant byte address 0x4 - core index']
  #allocation1 [shape = 'u32[72,128]{1,0:T(1,128)}', space=vmem, size = 0x9000, scoped, tag = 'internal scratch']
  %s0 = inlined_call_operand.vmem [shape: f32[8,16], index: 0, kind: input, shape index: {}]
  %s1 = inlined_call_operand.hbm [shape: f32[16,128], index: 1, kind: input, shape index: {}]
  %s2 = inlined_call_operand.vmem [shape: f32[1,128], index: 2, kind: input, shape index: {}]
  %s3 = inlined_call_operand.hbm [shape: f32[128,128], index: 3, kind: input, shape index: {}]
  %s4 = inlined_call_operand.vmem [shape: f32[1,128], index: 4, kind: input, shape index: {}]
  %s5 = inlined_call_operand.vmem [shape: f32[8,128], index: 5, kind: output, shape index: {}]
  %s6 = sld [smem:[#allocation0]]
  $region38: #{meta_learner_forward.1} parent=0
    _
  %s8 = ssub.s32 1, %s6
  %s9 = scalar_select 0, %s8, %s6
  $region1: #{meta_learner_forward.1} parent=0
    #allocation2 [shape = 'u8[8192]{0}', space=vmem, size = 0x2000, scoped, tag = 'input window, operand 1, single buffered']
    #allocation3 [shape = 's32[1]{0}', space=sflag, size = 0x4, scoped, tag = 'scoped memory for meta_learner_forward.1']
    #allocation4 [shape = 'u8[65536]{0}', space=vmem, size = 0x10000, scoped, tag = 'input window, operand 3, single buffered']
    #allocation5 [shape = 's32[1]{0}', space=sflag, size = 0x4, scoped, tag = 'scoped memory for meta_learner_forward.1']
    %10 = vsyncpa [#allocation3], 0
    %11 = vsyncpa [#allocation5], 0
    // Predicated region
    $region2: #{meta_learner_forward.1} parent=1 // pred_check
      _
    $region3: #{meta_learner_forward.1} parent=1 // pred_check_branch
      %13 = sbr.rel (0) target = $region5
    $region4: #{meta_learner_forward.1} parent=1 // pred_region
      _
    $region5: #{meta_learner_forward.1} parent=1 // pred_fallthru
      _
    // Predicated region
    $region6: #{meta_learner_forward.1} parent=1 // pred_check
      _
    $region7: #{meta_learner_forward.1} parent=1 // pred_check_branch
      %15 = sbr.rel (0) target = $region9
    $region8: #{meta_learner_forward.1} parent=1 // pred_region
      %17 = vsyncadd [#allocation3], 0
      %s18 = sshll.u32 %s1, 4
      %s19 = int_to_ptr.hbm [resolvable:$true] %s18
      %s20 = sshll.u32 [#allocation2], 4
      %s21 = int_to_ptr.vmem [resolvable:$true] %s20
      %26 = dma.hbm_to_vmem [thread:$0]  %s19, 256, %s21, [#allocation3], 128, 128, 8
    $region9: #{meta_learner_forward.1} parent=1 // pred_fallthru
      _
    // Predicated region
    $region10: #{meta_learner_forward.1} parent=1 // pred_check
      _
    $region11: #{meta_learner_forward.1} parent=1 // pred_check_branch
      %28 = sbr.rel (0) target = $region13
    $region12: #{meta_learner_forward.1} parent=1 // pred_region
      _
    $region13: #{meta_learner_forward.1} parent=1 // pred_fallthru
      _
    // Predicated region
    $region14: #{meta_learner_forward.1} parent=1 // pred_check
      _
    $region15: #{meta_learner_forward.1} parent=1 // pred_check_branch
      %30 = sbr.rel (0) target = $region17
    $region16: #{meta_learner_forward.1} parent=1 // pred_region
      %32 = vsyncadd [#allocation5], 0
      %s33 = sshll.u32 %s3, 4
      %s34 = int_to_ptr.hbm [resolvable:$true] %s33
      %s35 = sshll.u32 [#allocation4], 4
      %s36 = int_to_ptr.vmem [resolvable:$true] %s35
      %41 = dma.hbm_to_vmem [thread:$0]  %s34, 2048, %s36, [#allocation5], 128, 128, 8
    $region17: #{meta_learner_forward.1} parent=1 // pred_fallthru
      _
    // Predicated region
    $region18: #{meta_learner_forward.1} parent=1 // pred_check
      _
    $region19: #{meta_learner_forward.1} parent=1 // pred_check_branch
      %43 = sbr.rel (0) target = $region21
    $region20: #{meta_learner_forward.1} parent=1 // pred_region
      _
    $region21: #{meta_learner_forward.1} parent=1 // pred_fallthru
      _
    // Predicated region
    $region22: #{meta_learner_forward.1} parent=1 // pred_check
      _
    $region23: #{meta_learner_forward.1} parent=1 // pred_check_branch
      %45 = sbr.rel (0) target = $region25
    $region24: #{meta_learner_forward.1} parent=1 // pred_region
      %47 = dma.done [#allocation3], 256
    $region25: #{meta_learner_forward.1} parent=1 // pred_fallthru
      _
    // Predicated region
    $region26: #{meta_learner_forward.1} parent=1 // pred_check
      _
    $region27: #{meta_learner_forward.1} parent=1 // pred_check_branch
      %49 = sbr.rel (0) target = $region29
    $region28: #{meta_learner_forward.1} parent=1 // pred_region
      %51 = dma.done [#allocation5], 2048
    $region29: #{meta_learner_forward.1} parent=1 // pred_fallthru
      _
    %v52 = vld [vmem:[%s0] sm:$0xff]
    %v53 = vld [vmem:[#allocation2] sm:$0xff]
    %v54 = vld [vmem:[#allocation2 + $0x8] sm:$0xff]
    %v55 = vld [vmem:[%s2] sm:$0x1]
    %v57 = vperm.slane %v55, 0
    %vm59 = vcmask 130048
    %v61 = vsel %vm59, %v52, 0
    %63 = vmatpush.msra.mxu0 0.0
    %64 = vmatpush.msra.mxu0 0.0
    %65 = vmatpush.msra.mxu0 0.0
    %66 = vmatpush.msra.mxu0 0.0
    %67 = vmatpush.msra.mxu0 0.0
    %68 = vmatpush.msra.mxu0 0.0
    %69 = vmatpush.msra.mxu0 0.0
    %70 = vmatpush.msra.mxu0 0.0
    %71 = vmatpush.msra.mxu0 0.0
    %72 = vmatpush.msra.mxu0 0.0
    %73 = vmatpush.msra.mxu0 0.0
    %74 = vmatpush.msra.mxu0 0.0
    %75 = vmatpush.msra.mxu0 0.0
    %76 = vmatpush.msra.mxu0 0.0
    %77 = vmatpush.msra.mxu0 %v54
    %78 = vmatpush.msra.mxu0 %v53
    %79 = vmatmul.f32.gmra.mxu0 %v61
    %v80 = vpop.f32.mrf.mxu0
    %v81 = vadd.f32 %v57, %v80
    %82 = vdwg.mxu0
    %v83 = vmax.f32 %v81, 0.0
    %v84 = vld [vmem:[#allocation4] sm:$0xff]
    %v85 = vld [vmem:[#allocation4 + $0x8] sm:$0xff]
    %v86 = vld [vmem:[#allocation4 + $0x10] sm:$0xff]
    %v87 = vld [vmem:[#allocation4 + $0x18] sm:$0xff]
    %v88 = vld [vmem:[#allocation4 + $0x20] sm:$0xff]
    %v89 = vld [vmem:[#allocation4 + $0x28] sm:$0xff]
    %v90 = vld [vmem:[#allocation4 + $0x30] sm:$0xff]
    %v91 = vld [vmem:[#allocation4 + $0x38] sm:$0xff]
    %v92 = vld [vmem:[#allocation4 + $0x40] sm:$0xff]
    %v93 = vld [vmem:[#allocation4 + $0x48] sm:$0xff]
    %v94 = vld [vmem:[#allocation4 + $0x50] sm:$0xff]
    %v95 = vld [vmem:[#allocation4 + $0x58] sm:$0xff]
    %v96 = vld [vmem:[#allocation4 + $0x60] sm:$0xff]
    %v97 = vld [vmem:[#allocation4 + $0x68] sm:$0xff]
    %v98 = vld [vmem:[#allocation4 + $0x70] sm:$0xff]
    %v99 = vld [vmem:[#allocation4 + $0x78] sm:$0xff]
    %v100 = vld [vmem:[%s4] sm:$0x1]
    %v102 = vperm.slane %v100, 0
    %104 = vmatpush.msra.mxu0 %v99
    %105 = vmatpush.msra.mxu0 %v98
    %106 = vmatpush.msra.mxu0 %v97
    %107 = vmatpush.msra.mxu0 %v96
    %108 = vmatpush.msra.mxu0 %v95
    %109 = vmatpush.msra.mxu0 %v94
    %110 = vmatpush.msra.mxu0 %v93
    %111 = vmatpush.msra.mxu0 %v92
    %112 = vmatpush.msra.mxu0 %v91
    %113 = vmatpush.msra.mxu0 %v90
    %114 = vmatpush.msra.mxu0 %v89
    %115 = vmatpush.msra.mxu0 %v88
    %116 = vmatpush.msra.mxu0 %v87
    %117 = vmatpush.msra.mxu0 %v86
    %118 = vmatpush.msra.mxu0 %v85
    %119 = vmatpush.msra.mxu0 %v84
    %120 = vmatmul.f32.gmra.mxu0 %v83
    %v121 = vpop.f32.mrf.mxu0
    %v122 = vadd.f32 %v102, %v121
    %123 = vdwg.mxu0
    %124 = vst [vmem:[%s5] sm:$0xff] %v122
    // Predicated region
    $region30: #{meta_learner_forward.1} parent=1 // pred_check
      _
    $region31: #{meta_learner_forward.1} parent=1 // pred_check_branch
      %126 = sbr.rel (0) target = $region33
    $region32: #{meta_learner_forward.1} parent=1 // pred_region
      _
    $region33: #{meta_learner_forward.1} parent=1 // pred_fallthru
      _
    // Predicated region
    $region34: #{meta_learner_forward.1} parent=1 // pred_check
      _
    $region35: #{meta_learner_forward.1} parent=1 // pred_check_branch
      %128 = sbr.rel (0) target = $region37
    $region36: #{meta_learner_forward.1} parent=1 // pred_region
      _
    $region37: #{meta_learner_forward.1} parent=1 // pred_fallthru
      _
    %129 = vsyncpa [#allocation3], 1
    %130 = vsyncpa [#allocation5], 1

</llo_original>
